<compile_context>
chip_gen: v5e
topology: v5e:2x2
jax: 0.10.0
libtpu: 0.0.40
codegen_flags: <defaults>
</compile_context>

<pallas_src>
import jax
import jax.numpy as jnp
from jax import lax
from jax.experimental import pallas as pl
from jax.experimental.pallas import tpu as pltpu


def _nonlocal_flash_kernel(xq_ref, xk_ref, wq_ref, wk_ref, wv_ref, o_ref,
                           m_sc, l_sc, acc_sc):
    # xq_ref: (C, TQ) query-side pixel tile       (channels-first)
    # xk_ref: (C, TK) key/value-side pixel tile
    # wq_ref/wk_ref: (C//2, C), wv_ref: (C, C)
    # o_ref : (C, TQ)
    # m_sc, l_sc: (1, TQ) f32 online-softmax stats; acc_sc: (C, TQ) f32.
    ki = pl.program_id(2)

    @pl.when(ki == 0)
    def _():
        m_sc[...] = jnp.full_like(m_sc, -jnp.inf)
        l_sc[...] = jnp.zeros_like(l_sc)
        acc_sc[...] = jnp.zeros_like(acc_sc)

    # bf16 MXU operands, fp32 accumulation.
    xq = xq_ref[...].astype(jnp.bfloat16)          # (C, TQ)
    xk = xk_ref[...].astype(jnp.bfloat16)          # (C, TK)
    wq = wq_ref[...].astype(jnp.bfloat16)          # (Cq, C)
    wk = wk_ref[...].astype(jnp.bfloat16)          # (Cq, C)
    wv = wv_ref[...].astype(jnp.bfloat16)          # (C, C)

    # 1x1 convolutions == channel matmuls (no transposes needed).
    q = jnp.dot(wq, xq, preferred_element_type=jnp.float32)   # (Cq, TQ)
    k = jnp.dot(wk, xk, preferred_element_type=jnp.float32)   # (Cq, TK)
    v = jnp.dot(wv, xk, preferred_element_type=jnp.float32)   # (C,  TK)

    # s[m, n] = <k_m, q_n>  -> (TK, TQ); softmax runs over m (axis 0),
    # i.e. over key positions, matching softmax(attention, dim=-1).
    s = lax.dot_general(
        k.astype(jnp.bfloat16), q.astype(jnp.bfloat16),
        dimension_numbers=(((0,), (0,)), ((), ())),
        preferred_element_type=jnp.float32)                    # (TK, TQ)

    m_prev = m_sc[...]                                         # (1, TQ)
    m_new = jnp.maximum(m_prev, jnp.max(s, axis=0, keepdims=True))
    alpha = jnp.exp(m_prev - m_new)                            # (1, TQ)
    p = jnp.exp(s - m_new)                                     # (TK, TQ)

    l_sc[...] = alpha * l_sc[...] + jnp.sum(p, axis=0, keepdims=True)
    acc_sc[...] = alpha * acc_sc[...] + jnp.dot(
        v.astype(jnp.bfloat16), p.astype(jnp.bfloat16),
        preferred_element_type=jnp.float32)                    # (C, TQ)
    m_sc[...] = m_new

    @pl.when(ki == pl.num_programs(2) - 1)
    def _():
        inv_l = pl.reciprocal(l_sc[...], approx=True)          # (1, TQ)
        o_ref[...] = (acc_sc[...] * inv_l).astype(o_ref.dtype)


def nonlocal_block(x_nchw, wq, wk, wv):
    """x_nchw: (B, C, H, W) float32.  wq, wk: (C//2, C).  wv: (C, C)."""
    B, C, H, W = x_nchw.shape
    HW = H * W
    Cq = wq.shape[0]

    # Channel-first pixel matrix -- a free reshape, no transpose.
    x = x_nchw.reshape(B, C, HW)

    # Tile the spatial axis (lane axis).  Keep tiles 128-aligned when possible.
    # TODO(synk): add masked handling for HW not divisible by 128 (currently
    # falls back to a single full tile in that case).
    if HW % 256 == 0 and HW > 256:
        TQ = TK = 256
    elif HW % 128 == 0:
        TQ = TK = 128
    else:
        TQ = TK = HW
    n_q = HW // TQ
    n_k = HW // TK

    cost = pl.CostEstimate(
        flops=int(2 * B * HW * C * (2 * C)            # q/k/v projections
                  + 2 * B * HW * HW * Cq              # K^T Q
                  + 2 * B * HW * HW * C),             # V @ P
        transcendentals=int(B * HW * HW),
        bytes_accessed=int(4 * (2 * x.size + x.size
                                + wq.size + wk.size + wv.size)),
    )

    out = pl.pallas_call(
        _nonlocal_flash_kernel,
        out_shape=jax.ShapeDtypeStruct((B, C, HW), x.dtype),
        grid_spec=pltpu.PrefetchScalarGridSpec(
            num_scalar_prefetch=0,
            grid=(B, n_q, n_k),
            in_specs=[
                # query-side pixel tile
                pl.BlockSpec((None, C, TQ), lambda b, qi, ki: (b, 0, qi)),
                # key/value-side pixel tile
                pl.BlockSpec((None, C, TK), lambda b, qi, ki: (b, 0, ki)),
                # weights: full, resident
                pl.BlockSpec((Cq, C), lambda b, qi, ki: (0, 0)),
                pl.BlockSpec((Cq, C), lambda b, qi, ki: (0, 0)),
                pl.BlockSpec((C, C), lambda b, qi, ki: (0, 0)),
            ],
            out_specs=pl.BlockSpec((None, C, TQ), lambda b, qi, ki: (b, 0, qi)),
            scratch_shapes=[
                pltpu.VMEM((1, TQ), jnp.float32),   # running max
                pltpu.VMEM((1, TQ), jnp.float32),   # running denom
                pltpu.VMEM((C, TQ), jnp.float32),   # output accumulator
            ],
        ),
        compiler_params=pltpu.CompilerParams(
            dimension_semantics=("parallel", "parallel", "arbitrary")),
        cost_estimate=cost,
    )(x, x, wq, wk, wv)

    # Free reshape back to NCHW.
    return out.reshape(B, C, H, W)


def _reference(x_nchw, wq, wk, wv):
    """Pure-JAX fp32 reference mirroring the PyTorch forward exactly."""
    B, C, H, W = x_nchw.shape
    HW = H * W
    x = x_nchw.reshape(B, C, HW)                              # (B, C, HW)
    query = jnp.einsum("qc,bcn->bnq", wq, x)                  # (B, HW, C//2)
    key = jnp.einsum("kc,bcn->bkn", wk, x)                    # (B, C//2, HW)
    value = jnp.einsum("vc,bcn->bvn", wv, x)                  # (B, C, HW)
    att = jnp.einsum("bnq,bqm->bnm", query, key)              # (B, HW, HW)
    att = jax.nn.softmax(att, axis=-1)
    out = jnp.einsum("bvn,bmn->bvm", value, att)              # (B, C, HW)
    return out.reshape(B, C, H, W)


if __name__ == "__main__":
    B, C, H, W = 2, 4, 16, 16

    key = jax.random.PRNGKey(0)
    kx, kq, kk, kv = jax.random.split(key, 4)
    x = jax.random.normal(kx, (B, C, H, W), dtype=jnp.float32)
    # Shapes from nn.Conv2d(C, C//2, 1, bias=False) / nn.Conv2d(C, C, 1, bias=False).
    wq = jax.random.normal(kq, (C // 2, C), dtype=jnp.float32) * 0.1
    wk = jax.random.normal(kk, (C // 2, C), dtype=jnp.float32) * 0.1
    wv = jax.random.normal(kv, (C, C), dtype=jnp.float32) * 0.1

    out = nonlocal_block(x, wq, wk, wv)
    jax.block_until_ready(out)

    ref = _reference(x, wq, wk, wv)
    assert out.shape == (B, C, H, W)
    # bf16 MXU operands + approx reciprocal -> loosened tolerance vs fp32 ref.
    assert jnp.allclose(out, ref, atol=2e-2, rtol=2e-2), float(
        jnp.max(jnp.abs(out - ref)))
    print("KERNEL_OK")
</pallas_src>

<mosaic_0001>
module attributes {stable_mosaic.version = 11 : i64} {
  func.func @_nonlocal_flash_kernel(%arg0: i32, %arg1: i32, %arg2: i32, %arg3: memref<1x4x128xf32, #tpu.memory_space<vmem>>, %arg4: memref<1x4x128xf32, #tpu.memory_space<vmem>>, %arg5: memref<2x4xf32, #tpu.memory_space<vmem>>, %arg6: memref<2x4xf32, #tpu.memory_space<vmem>>, %arg7: memref<4x4xf32, #tpu.memory_space<vmem>>, %arg8: memref<1x4x128xf32, #tpu.memory_space<vmem>>, %arg9: memref<1x128xf32, #tpu.memory_space<vmem>>, %arg10: memref<1x128xf32, #tpu.memory_space<vmem>>, %arg11: memref<4x128xf32, #tpu.memory_space<vmem>>) attributes {dimension_semantics = [#tpu.dimension_semantics<parallel>, #tpu.dimension_semantics<parallel>, #tpu.dimension_semantics<arbitrary>], iteration_bounds = array<i64: 2, 2, 2>, scalar_prefetch = 0 : i64, scratch_operands = 3 : i64, tpu.core_type = #tpu.core_type<tc>, window_params = [{transform_indices = @transform_0, window_bounds = array<i64: 1, 4, 128>}, {transform_indices = @transform_1, window_bounds = array<i64: 1, 4, 128>}, {pipeline_mode = #tpu.pipeline_mode<synchronous>, transform_indices = @transform_2, window_bounds = array<i64: 2, 4>}, {pipeline_mode = #tpu.pipeline_mode<synchronous>, transform_indices = @transform_3, window_bounds = array<i64: 2, 4>}, {pipeline_mode = #tpu.pipeline_mode<synchronous>, transform_indices = @transform_4, window_bounds = array<i64: 4, 4>}, {transform_indices = @transform_5, window_bounds = array<i64: 1, 4, 128>}]} {
    %c0_i32 = arith.constant 0 : i32
    %0 = arith.cmpi eq, %arg2, %c0_i32 : i32
    %1 = arith.extui %0 : i1 to i32
    %c0_i32_0 = arith.constant 0 : i32
    %2 = arith.cmpi ne, %1, %c0_i32_0 : i32
    scf.if %2 {
      %cst_31 = arith.constant 0xFF800000 : f32
      %48 = vector.broadcast %cst_31 : f32 to vector<1x128xf32>
      %c0_32 = arith.constant 0 : index
      %c0_33 = arith.constant 0 : index
      %49 = vector.load %arg9[%c0_32, %c0_33] : memref<1x128xf32, #tpu.memory_space<vmem>>, vector<1x128xf32>
      tpu.vector_store %arg9[%c0_32, %c0_33], %48 {strides = array<i32>} : memref<1x128xf32, #tpu.memory_space<vmem>>, vector<1x128xf32>,
      %cst_34 = arith.constant 0.000000e+00 : f32
      %50 = vector.broadcast %cst_34 : f32 to vector<1x128xf32>
      %c0_35 = arith.constant 0 : index
      %c0_36 = arith.constant 0 : index
      %51 = vector.load %arg10[%c0_35, %c0_36] : memref<1x128xf32, #tpu.memory_space<vmem>>, vector<1x128xf32>
      tpu.vector_store %arg10[%c0_35, %c0_36], %50 {strides = array<i32>} : memref<1x128xf32, #tpu.memory_space<vmem>>, vector<1x128xf32>,
      %cst_37 = arith.constant 0.000000e+00 : f32
      %52 = vector.broadcast %cst_37 : f32 to vector<4x128xf32>
      %c0_38 = arith.constant 0 : index
      %c0_39 = arith.constant 0 : index
      %53 = vector.load %arg11[%c0_38, %c0_39] : memref<4x128xf32, #tpu.memory_space<vmem>>, vector<4x128xf32>
      tpu.vector_store %arg11[%c0_38, %c0_39], %52 {strides = array<i32>} : memref<4x128xf32, #tpu.memory_space<vmem>>, vector<4x128xf32>,
    } else {
    }
    %c0 = arith.constant 0 : index
    %c0_1 = arith.constant 0 : index
    %c0_2 = arith.constant 0 : index
    %3 = vector.load %arg3[%c0, %c0_1, %c0_2] : memref<1x4x128xf32, #tpu.memory_space<vmem>>, vector<1x4x128xf32>
    %4 = vector.shape_cast %3 : vector<1x4x128xf32> to vector<4x128xf32>
    %5 = arith.truncf %4 : vector<4x128xf32> to vector<4x128xbf16>
    %c0_3 = arith.constant 0 : index
    %c0_4 = arith.constant 0 : index
    %c0_5 = arith.constant 0 : index
    %6 = vector.load %arg4[%c0_3, %c0_4, %c0_5] : memref<1x4x128xf32, #tpu.memory_space<vmem>>, vector<1x4x128xf32>
    %7 = vector.shape_cast %6 : vector<1x4x128xf32> to vector<4x128xf32>
    %8 = arith.truncf %7 : vector<4x128xf32> to vector<4x128xbf16>
    %c0_6 = arith.constant 0 : index
    %c0_7 = arith.constant 0 : index
    %9 = vector.load %arg5[%c0_6, %c0_7] : memref<2x4xf32, #tpu.memory_space<vmem>>, vector<2x4xf32>
    %10 = arith.truncf %9 : vector<2x4xf32> to vector<2x4xbf16>
    %c0_8 = arith.constant 0 : index
    %c0_9 = arith.constant 0 : index
    %11 = vector.load %arg6[%c0_8, %c0_9] : memref<2x4xf32, #tpu.memory_space<vmem>>, vector<2x4xf32>
    %12 = arith.truncf %11 : vector<2x4xf32> to vector<2x4xbf16>
    %c0_10 = arith.constant 0 : index
    %c0_11 = arith.constant 0 : index
    %13 = vector.load %arg7[%c0_10, %c0_11] : memref<4x4xf32, #tpu.memory_space<vmem>>, vector<4x4xf32>
    %14 = arith.truncf %13 : vector<4x4xf32> to vector<4x4xbf16>
    %cst = arith.constant dense<0.000000e+00> : vector<2x128xf32>
    %15 = tpu.matmul %10, %5, %cst {dimension_numbers = #tpu.dot_dimension_numbers<[1], [0], [0], [1], [0, 0, 1, 1], [], []>} : vector<2x4xbf16>, vector<4x128xbf16>, vector<2x128xf32> -> vector<2x128xf32>
    %cst_12 = arith.constant dense<0.000000e+00> : vector<2x128xf32>
    %16 = tpu.matmul %12, %8, %cst_12 {dimension_numbers = #tpu.dot_dimension_numbers<[1], [0], [0], [1], [0, 0, 1, 1], [], []>} : vector<2x4xbf16>, vector<4x128xbf16>, vector<2x128xf32> -> vector<2x128xf32>
    %cst_13 = arith.constant dense<0.000000e+00> : vector<4x128xf32>
    %17 = tpu.matmul %14, %8, %cst_13 {dimension_numbers = #tpu.dot_dimension_numbers<[1], [0], [0], [1], [0, 0, 1, 1], [], []>} : vector<4x4xbf16>, vector<4x128xbf16>, vector<4x128xf32> -> vector<4x128xf32>
    %18 = arith.truncf %16 : vector<2x128xf32> to vector<2x128xbf16>
    %19 = arith.truncf %15 : vector<2x128xf32> to vector<2x128xbf16>
    %cst_14 = arith.constant dense<0.000000e+00> : vector<128x128xf32>
    %20 = tpu.matmul %18, %19, %cst_14 {dimension_numbers = #tpu.dot_dimension_numbers<[0], [0], [1], [1], [0, 1, 1, 1], [], []>} : vector<2x128xbf16>, vector<2x128xbf16>, vector<128x128xf32> -> vector<128x128xf32>
    %c0_15 = arith.constant 0 : index
    %c0_16 = arith.constant 0 : index
    %21 = vector.load %arg9[%c0_15, %c0_16] : memref<1x128xf32, #tpu.memory_space<vmem>>, vector<1x128xf32>
    %cst_17 = arith.constant dense<0xFF800000> : vector<128xf32>
    %22 = vector.multi_reduction <maximumf>, %20, %cst_17 [0] : vector<128x128xf32> to vector<128xf32>
    %23 = vector.shape_cast %22 : vector<128xf32> to vector<1x128xf32>
    %24 = arith.maximumf %21, %23 : vector<1x128xf32>
    %25 = arith.subf %21, %24 : vector<1x128xf32>
    %26 = math.exp %25 : vector<1x128xf32>
    %27 = vector.broadcast %24 : vector<1x128xf32> to vector<128x128xf32>
    %28 = arith.subf %20, %27 : vector<128x128xf32>
    %29 = math.exp %28 : vector<128x128xf32>
    %c0_18 = arith.constant 0 : index
    %c0_19 = arith.constant 0 : index
    %30 = vector.load %arg10[%c0_18, %c0_19] : memref<1x128xf32, #tpu.memory_space<vmem>>, vector<1x128xf32>
    %31 = arith.mulf %26, %30 : vector<1x128xf32>
    %cst_20 = arith.constant dense<0.000000e+00> : vector<128xf32>
    %32 = vector.multi_reduction <add>, %29, %cst_20 [0] : vector<128x128xf32> to vector<128xf32>
    %33 = vector.shape_cast %32 : vector<128xf32> to vector<1x128xf32>
    %34 = arith.addf %31, %33 : vector<1x128xf32>
    %c0_21 = arith.constant 0 : index
    %c0_22 = arith.constant 0 : index
    %35 = vector.load %arg10[%c0_21, %c0_22] : memref<1x128xf32, #tpu.memory_space<vmem>>, vector<1x128xf32>
    tpu.vector_store %arg10[%c0_21, %c0_22], %34 {strides = array<i32>} : memref<1x128xf32, #tpu.memory_space<vmem>>, vector<1x128xf32>,
    %c0_23 = arith.constant 0 : index
    %c0_24 = arith.constant 0 : index
    %36 = vector.load %arg11[%c0_23, %c0_24] : memref<4x128xf32, #tpu.memory_space<vmem>>, vector<4x128xf32>
    %37 = vector.broadcast %26 : vector<1x128xf32> to vector<4x128xf32>
    %38 = arith.mulf %37, %36 : vector<4x128xf32>
    %39 = arith.truncf %17 : vector<4x128xf32> to vector<4x128xbf16>
    %40 = arith.truncf %29 : vector<128x128xf32> to vector<128x128xbf16>
    %cst_25 = arith.constant dense<0.000000e+00> : vector<4x128xf32>
    %41 = tpu.matmul %39, %40, %cst_25 {dimension_numbers = #tpu.dot_dimension_numbers<[1], [0], [0], [1], [0, 0, 1, 1], [], []>} : vector<4x128xbf16>, vector<128x128xbf16>, vector<4x128xf32> -> vector<4x128xf32>
    %42 = arith.addf %38, %41 : vector<4x128xf32>
    %c0_26 = arith.constant 0 : index
    %c0_27 = arith.constant 0 : index
    %43 = vector.load %arg11[%c0_26, %c0_27] : memref<4x128xf32, #tpu.memory_space<vmem>>, vector<4x128xf32>
    tpu.vector_store %arg11[%c0_26, %c0_27], %42 {strides = array<i32>} : memref<4x128xf32, #tpu.memory_space<vmem>>, vector<4x128xf32>,
    %c0_28 = arith.constant 0 : index
    %c0_29 = arith.constant 0 : index
    %44 = vector.load %arg9[%c0_28, %c0_29] : memref<1x128xf32, #tpu.memory_space<vmem>>, vector<1x128xf32>
    tpu.vector_store %arg9[%c0_28, %c0_29], %24 {strides = array<i32>} : memref<1x128xf32, #tpu.memory_space<vmem>>, vector<1x128xf32>,
    %c1_i32 = arith.constant 1 : i32
    %45 = arith.cmpi eq, %arg2, %c1_i32 : i32
    %46 = arith.extui %45 : i1 to i32
    %c0_i32_30 = arith.constant 0 : i32
    %47 = arith.cmpi ne, %46, %c0_i32_30 : i32
    scf.if %47 {
      %c0_31 = arith.constant 0 : index
      %c0_32 = arith.constant 0 : index
      %48 = vector.load %arg10[%c0_31, %c0_32] : memref<1x128xf32, #tpu.memory_space<vmem>>, vector<1x128xf32>
      %49 = tpu.reciprocal %48 {approx = true} : vector<1x128xf32> -> vector<1x128xf32>
      %c0_33 = arith.constant 0 : index
      %c0_34 = arith.constant 0 : index
      %50 = vector.load %arg11[%c0_33, %c0_34] : memref<4x128xf32, #tpu.memory_space<vmem>>, vector<4x128xf32>
      %51 = vector.broadcast %49 : vector<1x128xf32> to vector<4x128xf32>
      %52 = arith.mulf %50, %51 : vector<4x128xf32>
      %c0_35 = arith.constant 0 : index
      %c0_36 = arith.constant 0 : index
      %c0_37 = arith.constant 0 : index
      %53 = vector.load %arg8[%c0_35, %c0_36, %c0_37] : memref<1x4x128xf32, #tpu.memory_space<vmem>>, vector<1x4x128xf32>
      %54 = vector.shape_cast %53 : vector<1x4x128xf32> to vector<4x128xf32>
      %55 = vector.shape_cast %52 : vector<4x128xf32> to vector<1x4x128xf32>
      tpu.vector_store %arg8[%c0_35, %c0_36, %c0_37], %55 {strides = array<i32>} : memref<1x4x128xf32, #tpu.memory_space<vmem>>, vector<1x4x128xf32>,
    } else {
    }
    return
  }
  func.func @transform_0(%arg0: i32, %arg1: i32, %arg2: i32) -> (i32, i32, i32) {
    %c0_i32 = arith.constant 0 : i32
    %c0_i32_0 = arith.constant 0 : i32
    return %arg0, %c0_i32, %arg1 : i32, i32, i32
  }
  func.func @transform_1(%arg0: i32, %arg1: i32, %arg2: i32) -> (i32, i32, i32) {
    %c0_i32 = arith.constant 0 : i32
    %c0_i32_0 = arith.constant 0 : i32
    return %arg0, %c0_i32, %arg2 : i32, i32, i32
  }
  func.func @transform_2(%arg0: i32, %arg1: i32, %arg2: i32) -> (i32, i32) {
    %c0_i32 = arith.constant 0 : i32
    %c0_i32_0 = arith.constant 0 : i32
    %c0_i32_1 = arith.constant 0 : i32
    return %c0_i32, %c0_i32_0 : i32, i32
  }
  func.func @transform_3(%arg0: i32, %arg1: i32, %arg2: i32) -> (i32, i32) {
    %c0_i32 = arith.constant 0 : i32
    %c0_i32_0 = arith.constant 0 : i32
    %c0_i32_1 = arith.constant 0 : i32
    return %c0_i32, %c0_i32_0 : i32, i32
  }
  func.func @transform_4(%arg0: i32, %arg1: i32, %arg2: i32) -> (i32, i32) {
    %c0_i32 = arith.constant 0 : i32
    %c0_i32_0 = arith.constant 0 : i32
    %c0_i32_1 = arith.constant 0 : i32
    return %c0_i32, %c0_i32_0 : i32, i32
  }
  func.func @transform_5(%arg0: i32, %arg1: i32, %arg2: i32) -> (i32, i32, i32) {
    %c0_i32 = arith.constant 0 : i32
    %c0_i32_0 = arith.constant 0 : i32
    return %arg0, %c0_i32, %arg1 : i32, i32, i32
  }
}

</mosaic_0001>

<llo_original>
// kernel: tpu_custom_call.1
$region0: #{tpu_custom_call.1}
  #allocation0 [shape = 'u32[]', space=smem, size = 0x4, offset = 0x4, fixed_abs, tag = 'smem constant byte address 0x4 - core index']
  #allocation1 [shape = 'u32[72,128]{1,0:T(1,128)}', space=vmem, size = 0x9000, scoped, tag = 'internal scratch']
  #allocation2 [shape = 'f32[1,128]{1,0:T(1,128)}', space=vmem, size = 0x200, scoped, tag = 'scratch operand']
  #allocation3 [shape = 'f32[1,128]{1,0:T(1,128)}', space=vmem, size = 0x200, scoped, tag = 'scratch operand']
  #allocation4 [shape = 'f32[4,128]{1,0:T(4,128)}', space=vmem, size = 0x800, scoped, tag = 'scratch operand']
  %s0 = inlined_call_operand.hbm [shape: f32[2,4,256], index: 0, kind: input, shape index: {}]
  %s1 = inlined_call_operand.hbm [shape: f32[2,4,256], index: 1, kind: input, shape index: {}]
  %s2 = inlined_call_operand.hbm [shape: f32[2,4], index: 2, kind: input, shape index: {}]
  %s3 = inlined_call_operand.vmem [shape: f32[2,4], index: 3, kind: input, shape index: {}]
  %s4 = inlined_call_operand.hbm [shape: f32[4,4], index: 4, kind: input, shape index: {}]
  %s5 = inlined_call_operand.hbm [shape: f32[2,4,256], index: 5, kind: output, shape index: {}]
  %s6 = sld [smem:[#allocation0]]
  $region77: #{tpu_custom_call.1} parent=0
    _
  %s8 = ssub.s32 1, %s6
  %s9 = scalar_select 0, %s8, %s6
  $region1: #{tpu_custom_call.1} parent=0
    #allocation5 [shape = 'u8[4096]{0}', space=vmem, size = 0x1000, scoped, tag = 'input window, operand 0']
    #allocation6 [shape = 's32[2]{0}', space=sflag, size = 0x8, scoped, tag = 'scoped memory for tpu_custom_call.1']
    #allocation7 [shape = 's32[2]{0}', space=sflag, size = 0x8, scoped, tag = 'scoped memory for tpu_custom_call.1']
    #allocation8 [shape = 'u8[4096]{0}', space=vmem, size = 0x1000, scoped, tag = 'input window, operand 1']
    #allocation9 [shape = 's32[2]{0}', space=sflag, size = 0x8, scoped, tag = 'scoped memory for tpu_custom_call.1']
    #allocation10 [shape = 'u8[1024]{0}', space=vmem, size = 0x400, scoped, tag = 'input window, operand 2, single buffered']
    #allocation11 [shape = 'u8[2048]{0}', space=vmem, size = 0x800, scoped, tag = 'input window, operand 4, single buffered']
    #allocation12 [shape = 's32[1]{0}', space=sflag, size = 0x4, scoped, tag = 'scoped memory for tpu_custom_call.1']
    #allocation13 [shape = 'u8[4096]{0}', space=vmem, size = 0x1000, scoped, tag = 'output window, operand 0']
    %10 = vsyncpa [#allocation6], 0
    %s11 = scalar_lea.sflag [#allocation6], 1
    %12 = vsyncpa %s11, 0
    %13 = vsyncpa [#allocation9], 0
    %s14 = scalar_lea.sflag [#allocation9], 1
    %15 = vsyncpa %s14, 0
    %16 = vsyncpa [#allocation12], 0
    %17 = vsyncpa [#allocation7], 0
    %s18 = scalar_lea.sflag [#allocation7], 1
    %19 = vsyncpa %s18, 0
    loop: start=0, step=1, limit=10
    $region2: #{tpu_custom_call.1} parent=1 // loop_pre_header
      _
    $region3: #{tpu_custom_call.1} parent=1 // loop_header
      %s21 = sphi 0, %s25
      %p22 = scmp.ge.s32.totalorder %s21, 10
      %s28 = sphi 0, %s47
      %s29 = sphi 0, %s43
      %s30 = sphi 0, %s39
      %s31 = sphi 0, %s28
      %s32 = sphi 0, %s29
      %s33 = sphi 0, %s30
      %s34 = sphi 0, %s31
      %s35 = sphi 0, %s32
      %s36 = sphi 0, %s33
      %s52 = sphi 0, %s54
      %s55 = sphi 0, %s52
      %s56 = sphi 0, %s55
      %s72 = sphi 0, %s56
      %s80 = sphi 0, %s82
      %s83 = sphi 0, %s80
      %s84 = sphi 0, %s83
      %s100 = sphi 0, %s84
      %s104 = sphi 0, %s104
      %s106 = sphi 0, %s104
      %s107 = sphi 0, %s106
      %s121 = sphi 0, %s107
      %s125 = sphi 0, %s125
      %s127 = sphi 0, %s125
      %s128 = sphi 0, %s127
      %s142 = sphi 0, %s128
      %s146 = sphi 0, %s146
      %s148 = sphi 0, %s146
      %s149 = sphi 0, %s148
      %s163 = sphi 0, %s149
      %s171 = sphi 0, %s173
      %s174 = sphi 0, %s171
      %s175 = sphi 0, %s174
      %s191 = sphi 0, %s175
    $region4: #{tpu_custom_call.1} parent=1 // loop_header_branch
      %24 = sbr.rel (%p22) target = $region8
    $region5: #{tpu_custom_call.1} parent=1 // loop_body
      %s26 = ssub.s32 %s21, 1
      %s27 = ssub.s32 %s21, 2
      %s37 = sadd.s32 1, %s30
      %p38 = scmp.ge.s32.totalorder %s37, 2
      %s39 = scalar_select %p38, 0, %s37
      %s40 = sadd.s32 1, %s29
      %s41 = scalar_select %p38, %s40, %s29
      %p42 = scmp.ge.s32.totalorder %s41, 2
      %s43 = scalar_select %p42, 0, %s41
      %s44 = sadd.s32 1, %s28
      %s45 = scalar_select %p42, %s44, %s28
      %p46 = scmp.ge.s32.totalorder %s45, 2
      %s47 = scalar_select %p46, 0, %s45
      %s48 = ssub.s32 %s28, %s47
      %s49 = ssub.s32 %s29, %s43
      %s50 = sor.u32 %s48, %s49
      %p51 = scmp.eq.s32.totalorder %s50, 0
      %s53 = sadd.s32 %s52, 1
      %s54 = scalar_select %p51, %s52, %s53
      %p57 = pneg %p51
      %p58 = scmp.eq.s32.totalorder %s21, 7
      %p59 = por %p57, %p58
      %p60 = scmp.ne.s32.totalorder %s52, %s55
      %p61 = scmp.eq.s32.totalorder %s21, 0
      %p62 = por %p60, %p61
      %p63 = scmp.ne.s32.totalorder %s52, %s55
      %p64 = scmp.eq.s32.totalorder %s26, 7
      %p65 = por %p63, %p64
      %p66 = scmp.ne.s32.totalorder %s55, %s56
      %p67 = scmp.eq.s32.totalorder %s26, 0
      %p68 = por %p66, %p67
      %p69 = scmp.ne.s32.totalorder %s55, %s56
      %p70 = scmp.eq.s32.totalorder %s27, 7
      %p71 = por %p69, %p70
      %p73 = scmp.ne.s32.totalorder %s56, %s72
      %p74 = scmp.eq.s32.totalorder %s27, 0
      %p75 = por %p73, %p74
      %s76 = ssub.s32 %s28, %s47
      %s77 = ssub.s32 %s30, %s39
      %s78 = sor.u32 %s76, %s77
      %p79 = scmp.eq.s32.totalorder %s78, 0
      %s81 = sadd.s32 %s80, 1
      %s82 = scalar_select %p79, %s80, %s81
      %p85 = pneg %p79
      %p86 = scmp.eq.s32.totalorder %s21, 7
      %p87 = por %p85, %p86
      %p88 = scmp.ne.s32.totalorder %s80, %s83
      %p89 = scmp.eq.s32.totalorder %s21, 0
      %p90 = por %p88, %p89
      %p91 = scmp.ne.s32.totalorder %s80, %s83
      %p92 = scmp.eq.s32.totalorder %s26, 7
      %p93 = por %p91, %p92
      %p94 = scmp.ne.s32.totalorder %s83, %s84
      %p95 = scmp.eq.s32.totalorder %s26, 0
      %p96 = por %p94, %p95
      %p97 = scmp.ne.s32.totalorder %s83, %s84
      %p98 = scmp.eq.s32.totalorder %s27, 7
      %p99 = por %p97, %p98
      %p101 = scmp.ne.s32.totalorder %s84, %s100
      %p102 = scmp.eq.s32.totalorder %s27, 0
      %p103 = por %p101, %p102
      %s105 = sadd.s32 %s104, 1
      %p108 = scmp.eq.s32.totalorder %s21, 7
      %p109 = scmp.ne.s32.totalorder %s104, %s106
      %p110 = scmp.eq.s32.totalorder %s21, 0
      %p111 = por %p109, %p110
      %p112 = scmp.ne.s32.totalorder %s104, %s106
      %p113 = scmp.eq.s32.totalorder %s26, 7
      %p114 = por %p112, %p113
      %p115 = scmp.ne.s32.totalorder %s106, %s107
      %p116 = scmp.eq.s32.totalorder %s26, 0
      %p117 = por %p115, %p116
      %p118 = scmp.ne.s32.totalorder %s106, %s107
      %p119 = scmp.eq.s32.totalorder %s27, 7
      %p120 = por %p118, %p119
      %p122 = scmp.ne.s32.totalorder %s107, %s121
      %p123 = scmp.eq.s32.totalorder %s27, 0
      %p124 = por %p122, %p123
      %s126 = sadd.s32 %s125, 1
      %p129 = scmp.eq.s32.totalorder %s21, 7
      %p130 = scmp.ne.s32.totalorder %s125, %s127
      %p131 = scmp.eq.s32.totalorder %s21, 0
      %p132 = por %p130, %p131
      %p133 = scmp.ne.s32.totalorder %s125, %s127
      %p134 = scmp.eq.s32.totalorder %s26, 7
      %p135 = por %p133, %p134
      %p136 = scmp.ne.s32.totalorder %s127, %s128
      %p137 = scmp.eq.s32.totalorder %s26, 0
      %p138 = por %p136, %p137
      %p139 = scmp.ne.s32.totalorder %s127, %s128
      %p140 = scmp.eq.s32.totalorder %s27, 7
      %p141 = por %p139, %p140
      %p143 = scmp.ne.s32.totalorder %s128, %s142
      %p144 = scmp.eq.s32.totalorder %s27, 0
      %p145 = por %p143, %p144
      %s147 = sadd.s32 %s146, 1
      %p150 = scmp.eq.s32.totalorder %s21, 7
      %p151 = scmp.ne.s32.totalorder %s146, %s148
      %p152 = scmp.eq.s32.totalorder %s21, 0
      %p153 = por %p151, %p152
      %p154 = scmp.ne.s32.totalorder %s146, %s148
      %p155 = scmp.eq.s32.totalorder %s26, 7
      %p156 = por %p154, %p155
      %p157 = scmp.ne.s32.totalorder %s148, %s149
      %p158 = scmp.eq.s32.totalorder %s26, 0
      %p159 = por %p157, %p158
      %p160 = scmp.ne.s32.totalorder %s148, %s149
      %p161 = scmp.eq.s32.totalorder %s27, 7
      %p162 = por %p160, %p161
      %p164 = scmp.ne.s32.totalorder %s149, %s163
      %p165 = scmp.eq.s32.totalorder %s27, 0
      %p166 = por %p164, %p165
      %s167 = ssub.s32 %s28, %s47
      %s168 = ssub.s32 %s29, %s43
      %s169 = sor.u32 %s167, %s168
      %p170 = scmp.eq.s32.totalorder %s169, 0
      %s172 = sadd.s32 %s171, 1
      %s173 = scalar_select %p170, %s171, %s172
      %p176 = pneg %p170
      %p177 = scmp.eq.s32.totalorder %s21, 7
      %p178 = por %p176, %p177
      %p179 = scmp.ne.s32.totalorder %s171, %s174
      %p180 = scmp.eq.s32.totalorder %s21, 0
      %p181 = por %p179, %p180
      %p182 = scmp.ne.s32.totalorder %s171, %s174
      %p183 = scmp.eq.s32.totalorder %s26, 7
      %p184 = por %p182, %p183
      %p185 = scmp.ne.s32.totalorder %s174, %s175
      %p186 = scmp.eq.s32.totalorder %s26, 0
      %p187 = por %p185, %p186
      %p188 = scmp.ne.s32.totalorder %s174, %s175
      %p189 = scmp.eq.s32.totalorder %s27, 7
      %p190 = por %p188, %p189
      %p192 = scmp.ne.s32.totalorder %s175, %s191
      %p193 = scmp.eq.s32.totalorder %s27, 0
      %p194 = por %p192, %p193
      %p195 = scmp.le.s32.totalorder 1, %s21
      %p196 = scmp.lt.s32.totalorder %s21, 9
      %p197 = pnand %p195, %p196
      %p198 = pneg %p197
      // Predicated region
      $region9: #{tpu_custom_call.1} parent=5 // pred_check
        _
      $region10: #{tpu_custom_call.1} parent=5 // pred_check_branch
        %200 = sbr.rel (%p197) target = $region12
      $region11: #{tpu_custom_call.1} parent=5 // pred_region
        %s201 = ssub.s32 %s21, 1
        // Predicated region
        $region13: #{tpu_custom_call.1} parent=11 // pred_check
          %p202 = pneg %p117
        $region14: #{tpu_custom_call.1} parent=11 // pred_check_branch
          %204 = sbr.rel (%p202) target = $region16
        $region15: #{tpu_custom_call.1} parent=11 // pred_region
          %206 = vsyncadd [#allocation9], 0
          %s208 = sshll.u32 %s2, 4
          %s209 = int_to_ptr.hbm [resolvable:$true] %s208
          %s210 = sshll.u32 [#allocation10], 4
          %s211 = int_to_ptr.vmem [resolvable:$true] %s210
          %213 = dma.hbm_to_vmem [thread:$0]  %s209, 32, %s211, [#allocation9]
        $region16: #{tpu_custom_call.1} parent=11 // pred_fallthru
          _
        // Predicated region
        $region17: #{tpu_custom_call.1} parent=11 // pred_check
          %p214 = pneg %p138
        $region18: #{tpu_custom_call.1} parent=11 // pred_check_branch
          %216 = sbr.rel (%p214) target = $region20
        $region19: #{tpu_custom_call.1} parent=11 // pred_region
          _
        $region20: #{tpu_custom_call.1} parent=11 // pred_fallthru
          _
        // Predicated region
        $region21: #{tpu_custom_call.1} parent=11 // pred_check
          %p217 = pneg %p159
        $region22: #{tpu_custom_call.1} parent=11 // pred_check_branch
          %219 = sbr.rel (%p217) target = $region24
        $region23: #{tpu_custom_call.1} parent=11 // pred_region
          %221 = vsyncadd [#allocation12], 0
          %s223 = sshll.u32 %s4, 4
          %s224 = int_to_ptr.hbm [resolvable:$true] %s223
          %s225 = sshll.u32 [#allocation11], 4
          %s226 = int_to_ptr.vmem [resolvable:$true] %s225
          %228 = dma.hbm_to_vmem [thread:$0]  %s224, 64, %s226, [#allocation12]
        $region24: #{tpu_custom_call.1} parent=11 // pred_fallthru
          _
      $region12: #{tpu_custom_call.1} parent=5 // pred_fallthru
        _
      %p229 = scmp.lt.s32.totalorder %s21, 8
      // Predicated region
      $region25: #{tpu_custom_call.1} parent=5 // pred_check
        %p230 = pneg %p229
      $region26: #{tpu_custom_call.1} parent=5 // pred_check_branch
        %232 = sbr.rel (%p230) target = $region28
      $region27: #{tpu_custom_call.1} parent=5 // pred_region
        // Predicated region
        $region29: #{tpu_custom_call.1} parent=27 // pred_check
          %p233 = pneg %p62
        $region30: #{tpu_custom_call.1} parent=27 // pred_check_branch
          %235 = sbr.rel (%p233) target = $region32
        $region31: #{tpu_custom_call.1} parent=27 // pred_region
          %s236 = sand.u32 %s52, 1
          %s237 = scalar_lea.sflag [#allocation6], %s236
          %s238 = sand.u32 %s52, 1
          %s239 = smul.addr %s238, 4
          %s240 = scalar_lea.vmem [#allocation5], %s239
          %242 = vsyncadd %s237, 0
          %s243 = smul.addr %s28, 2
          %s244 = sadd.s32 %s29, %s243
          %s245 = smul.addr %s244, 4
          %s246 = scalar_lea.hbm %s0, %s245
          %s248 = sshll.u32 %s246, 4
          %s249 = int_to_ptr.hbm [resolvable:$true] %s248
          %s250 = sshll.u32 %s240, 4
          %s251 = int_to_ptr.vmem [resolvable:$true] %s250
          %253 = dma.hbm_to_vmem [thread:$0]  %s249, 64, %s251, %s237
        $region32: #{tpu_custom_call.1} parent=27 // pred_fallthru
          _
        // Predicated region
        $region33: #{tpu_custom_call.1} parent=27 // pred_check
          %p254 = pneg %p90
        $region34: #{tpu_custom_call.1} parent=27 // pred_check_branch
          %256 = sbr.rel (%p254) target = $region36
        $region35: #{tpu_custom_call.1} parent=27 // pred_region
          %s257 = sand.u32 %s21, 1
          %s258 = scalar_lea.sflag [#allocation9], %s257
          %s259 = sand.u32 %s80, 1
          %s260 = smul.addr %s259, 4
          %s261 = scalar_lea.vmem [#allocation8], %s260
          %263 = vsyncadd %s258, 0
          %s264 = smul.addr %s28, 2
          %s265 = sadd.s32 %s30, %s264
          %s266 = smul.addr %s265, 4
          %s267 = scalar_lea.hbm %s1, %s266
          %s269 = sshll.u32 %s267, 4
          %s270 = int_to_ptr.hbm [resolvable:$true] %s269
          %s271 = sshll.u32 %s261, 4
          %s272 = int_to_ptr.vmem [resolvable:$true] %s271
          %274 = dma.hbm_to_vmem [thread:$0]  %s270, 64, %s272, %s258
        $region36: #{tpu_custom_call.1} parent=27 // pred_fallthru
          _
      $region28: #{tpu_custom_call.1} parent=5 // pred_fallthru
        _
      %p275 = scmp.le.s32.totalorder 1, %s21
      %p276 = scmp.lt.s32.totalorder %s21, 9
      %p277 = pnand %p275, %p276
      %p278 = pneg %p277
      // Predicated region
      $region37: #{tpu_custom_call.1} parent=5 // pred_check
        _
      $region38: #{tpu_custom_call.1} parent=5 // pred_check_branch
        %280 = sbr.rel (%p277) target = $region40
      $region39: #{tpu_custom_call.1} parent=5 // pred_region
        %s281 = ssub.s32 %s21, 1
        %s282 = sand.u32 %s55, 1
        %s283 = scalar_lea.sflag [#allocation6], %s282
        %s284 = sand.u32 %s55, 1
        %s285 = smul.addr %s284, 4
        %s286 = scalar_lea.vmem [#allocation5], %s285
        // Predicated region
        $region41: #{tpu_custom_call.1} parent=39 // pred_check
          %p287 = pneg %p68
        $region42: #{tpu_custom_call.1} parent=39 // pred_check_branch
          %289 = sbr.rel (%p287) target = $region44
        $region43: #{tpu_custom_call.1} parent=39 // pred_region
          %291 = dma.done %s283, 64
        $region44: #{tpu_custom_call.1} parent=39 // pred_fallthru
          _
        %s292 = sand.u32 %s26, 1
        %s293 = scalar_lea.sflag [#allocation9], %s292
        %s294 = sand.u32 %s83, 1
        %s295 = smul.addr %s294, 4
        %s296 = scalar_lea.vmem [#allocation8], %s295
        // Predicated region
        $region45: #{tpu_custom_call.1} parent=39 // pred_check
          %p297 = pneg %p96
        $region46: #{tpu_custom_call.1} parent=39 // pred_check_branch
          %299 = sbr.rel (%p297) target = $region48
        $region47: #{tpu_custom_call.1} parent=39 // pred_region
          %301 = dma.done %s293, 64
        $region48: #{tpu_custom_call.1} parent=39 // pred_fallthru
          _
        // Predicated region
        $region49: #{tpu_custom_call.1} parent=39 // pred_check
          %p302 = pneg %p117
        $region50: #{tpu_custom_call.1} parent=39 // pred_check_branch
          %304 = sbr.rel (%p302) target = $region52
        $region51: #{tpu_custom_call.1} parent=39 // pred_region
          %306 = dma.done [#allocation9], 32
        $region52: #{tpu_custom_call.1} parent=39 // pred_fallthru
          _
        // Predicated region
        $region53: #{tpu_custom_call.1} parent=39 // pred_check
          %p307 = pneg %p159
        $region54: #{tpu_custom_call.1} parent=39 // pred_check_branch
          %309 = sbr.rel (%p307) target = $region56
        $region55: #{tpu_custom_call.1} parent=39 // pred_region
          %311 = dma.done [#allocation12], 64
        $region56: #{tpu_custom_call.1} parent=39 // pred_fallthru
          _
        %s312 = sand.u32 %s55, 1
        %s313 = scalar_lea.sflag [#allocation6], %s312
        %s314 = sand.u32 %s55, 1
        %s315 = smul.addr %s314, 4
        %s316 = scalar_lea.vmem [#allocation5], %s315
        %p317 = pneg %p68
        %p318 = pneg %p65
        %s319 = sand.u32 %s26, 1
        %s320 = scalar_lea.sflag [#allocation9], %s319
        %s321 = sand.u32 %s83, 1
        %s322 = smul.addr %s321, 4
        %s323 = scalar_lea.vmem [#allocation8], %s322
        %p324 = pneg %p96
        %p325 = pneg %p93
        %p326 = pneg %p117
        %p327 = pneg %p114
        %p328 = pneg %p138
        %p329 = pneg %p135
        %p330 = pneg %p159
        %p331 = pneg %p156
        %p332 = pneg %p187
        %p333 = pneg %p184
        %s334 = sand.u32 %s174, 1
        %s335 = scalar_lea.sflag [#allocation7], %s334
        %s336 = sand.u32 %s174, 1
        %s337 = smul.addr %s336, 4
        %s338 = scalar_lea.vmem [#allocation13], %s337
        %p340 = scmp.eq.s32.totalorder %s33, 0
        // Predicated region
        $region57: #{tpu_custom_call.1} parent=39 // pred_check
          %p341 = pneg %p340
        $region58: #{tpu_custom_call.1} parent=39 // pred_check_branch
          %343 = sbr.rel (%p341) target = $region60
        $region59: #{tpu_custom_call.1} parent=39 // pred_region
          %344 = vst [vmem:[#allocation2] sm:$0x1] -inf
          %345 = vst [vmem:[#allocation3] sm:$0x1] 0.0
          %346 = vst [vmem:[#allocation4] sm:$0xf] 0.0
        $region60: #{tpu_custom_call.1} parent=39 // pred_fallthru
          _
        %v347 = vld [vmem:[%s286] sm:$0xf]
        %v348 = vpack.c.bf16 %v347, %v347
        %v349 = vld [vmem:[%s296] sm:$0xf]
        %v350 = vpack.c.bf16 %v349, %v349
        %v351 = vld [vmem:[#allocation10] sm:$0x3]
        %v352 = vpack.c.bf16 %v351, %v351
        %v353 = vld [vmem:[%s3] sm:$0x3]
        %v354 = vpack.c.bf16 %v353, %v353
        %v355 = vld [vmem:[#allocation11] sm:$0xf]
        %v356 = vpack.c.bf16 %v355, %v355
        %vm357 = vcmask 31744
        %v359 = vsel %vm357, %v352, 0
        %vm361 = vcmask 1041408
        %v363 = vsel %vm361, %v348, 0
        %365 = vmatpush.bf16.msra.mxu0 0
        %366 = vmatpush.bf16.msra.mxu0 0
        %367 = vmatpush.bf16.msra.mxu0 0
        %368 = vmatpush.bf16.msra.mxu0 0
        %369 = vmatpush.bf16.msra.mxu0 0
        %370 = vmatpush.bf16.msra.mxu0 0
        %371 = vmatpush.bf16.msra.mxu0 0
        %372 = vmatpush.bf16.msra.mxu0 %v363
        %373 = vmatmul.bf16.gmra.mxu0 %v359
        %v374 = vpop.f32.mrf.mxu0
        %v375 = vadd.f32 0.0, %v374
        %v376 = vpop.f32.mrf.mxu0
        %377 = vdwg.mxu0
        %v379 = vsel %vm357, %v354, 0
        %v382 = vsel %vm361, %v350, 0
        %384 = vmatpush.bf16.msra.mxu0 0
        %385 = vmatpush.bf16.msra.mxu0 0
        %386 = vmatpush.bf16.msra.mxu0 0
        %387 = vmatpush.bf16.msra.mxu0 0
        %388 = vmatpush.bf16.msra.mxu0 0
        %389 = vmatpush.bf16.msra.mxu0 0
        %390 = vmatpush.bf16.msra.mxu0 0
        %391 = vmatpush.bf16.msra.mxu0 %v382
        %392 = vmatmul.bf16.gmra.mxu0 %v379
        %v393 = vpop.f32.mrf.mxu0
        %v394 = vadd.f32 0.0, %v393
        %v395 = vpop.f32.mrf.mxu0
        %396 = vdwg.mxu0
        %v398 = vsel %vm357, %v356, 0
        %400 = vmatpush.bf16.msra.mxu0 0
        %401 = vmatpush.bf16.msra.mxu0 0
        %402 = vmatpush.bf16.msra.mxu0 0
        %403 = vmatpush.bf16.msra.mxu0 0
        %404 = vmatpush.bf16.msra.mxu0 0
        %405 = vmatpush.bf16.msra.mxu0 0
        %406 = vmatpush.bf16.msra.mxu0 0
        %407 = vmatpush.bf16.msra.mxu0 %v382
        %408 = vmatmul.bf16.gmra.mxu0 %v398
        %v409 = vpop.f32.mrf.mxu0
        %v410 = vadd.f32 0.0, %v409
        %v411 = vpop.f32.mrf.mxu0
        %412 = vdwg.mxu0
        %v413 = vpack.c.bf16 %v394, %v394
        %v414 = vpack.c.bf16 %v375, %v375
        %415 = vxpose.xlu0.c.b16.start [1/8] %v413, 128
        %416 = vxpose.xlu0.c.b16.cont [2/8] 0, 128
        %417 = vxpose.xlu0.c.b16.cont [3/8] 0, 128
        %418 = vxpose.xlu0.c.b16.cont [4/8] 0, 128
        %419 = vxpose.xlu0.c.b16.cont [5/8] 0, 128
        %420 = vxpose.xlu0.c.b16.cont [6/8] 0, 128
        %421 = vxpose.xlu0.c.b16.cont [7/8] 0, 128
        %422 = vxpose.xlu0.c.b16.end [8/8] 0, 128
        %v423 = vpop.trf.xlu0
        %v424 = vpop.trf.xlu0
        %v425 = vpop.trf.xlu0
        %v426 = vpop.trf.xlu0
        %v427 = vpop.trf.xlu0
        %v428 = vpop.trf.xlu0
        %v429 = vpop.trf.xlu0
        %v430 = vpop.trf.xlu0
        %vm431 = vcmask 15360
        %v433 = vsel %vm431, %v423, 0
        %v436 = vsel %vm431, %v424, 0
        %v439 = vsel %vm431, %v425, 0
        %v442 = vsel %vm431, %v426, 0
        %v445 = vsel %vm431, %v427, 0
        %v448 = vsel %vm431, %v428, 0
        %v451 = vsel %vm431, %v429, 0
        %v454 = vsel %vm431, %v430, 0
        %vm456 = vcmask 1040384
        %v458 = vsel %vm456, %v414, 0
        %460 = vmatpush.bf16.msra.mxu0 0
        %461 = vmatpush.bf16.msra.mxu0 0
        %462 = vmatpush.bf16.msra.mxu0 0
        %463 = vmatpush.bf16.msra.mxu0 0
        %464 = vmatpush.bf16.msra.mxu0 0
        %465 = vmatpush.bf16.msra.mxu0 0
        %466 = vmatpush.bf16.msra.mxu0 0
        %467 = vmatpush.bf16.msra.mxu0 %v458
        %468 = vmatmul.bf16.gmra.mxu0 %v433
        %v469 = vpop.f32.mrf.mxu0
        %v470 = vadd.f32 0.0, %v469
        %v471 = vpop.f32.mrf.mxu0
        %v472 = vadd.f32 0.0, %v471
        %473 = vmatmul.bf16.gmra.mxu0 %v436
        %v474 = vpop.f32.mrf.mxu0
        %v475 = vadd.f32 0.0, %v474
        %v476 = vpop.f32.mrf.mxu0
        %v477 = vadd.f32 0.0, %v476
        %478 = vmatmul.bf16.gmra.mxu0 %v439
        %v479 = vpop.f32.mrf.mxu0
        %v480 = vadd.f32 0.0, %v479
        %v481 = vpop.f32.mrf.mxu0
        %v482 = vadd.f32 0.0, %v481
        %483 = vmatmul.bf16.gmra.mxu0 %v442
        %v484 = vpop.f32.mrf.mxu0
        %v485 = vadd.f32 0.0, %v484
        %v486 = vpop.f32.mrf.mxu0
        %v487 = vadd.f32 0.0, %v486
        %488 = vmatmul.bf16.gmra.mxu0 %v445
        %v489 = vpop.f32.mrf.mxu0
        %v490 = vadd.f32 0.0, %v489
        %v491 = vpop.f32.mrf.mxu0
        %v492 = vadd.f32 0.0, %v491
        %493 = vmatmul.bf16.gmra.mxu0 %v448
        %v494 = vpop.f32.mrf.mxu0
        %v495 = vadd.f32 0.0, %v494
        %v496 = vpop.f32.mrf.mxu0
        %v497 = vadd.f32 0.0, %v496
        %498 = vmatmul.bf16.gmra.mxu0 %v451
        %v499 = vpop.f32.mrf.mxu0
        %v500 = vadd.f32 0.0, %v499
        %v501 = vpop.f32.mrf.mxu0
        %v502 = vadd.f32 0.0, %v501
        %503 = vmatmul.bf16.gmra.mxu0 %v454
        %v504 = vpop.f32.mrf.mxu0
        %v505 = vadd.f32 0.0, %v504
        %v506 = vpop.f32.mrf.mxu0
        %v507 = vadd.f32 0.0, %v506
        %508 = vdwg.mxu0
        %v509 = vld [vmem:[#allocation2] sm:$0x1]
        %v510 = vmax.f32 %v470, %v480
        %v511 = vmax.f32 %v472, %v482
        %v512 = vmax.f32 %v475, %v485
        %v513 = vmax.f32 %v477, %v487
        %v514 = vmax.f32 %v510, %v490
        %v515 = vmax.f32 %v511, %v492
        %v516 = vmax.f32 %v512, %v495
        %v517 = vmax.f32 %v513, %v497
        %v518 = vmax.f32 %v514, %v500
        %v519 = vmax.f32 %v515, %v502
        %v520 = vmax.f32 %v516, %v505
        %v521 = vmax.f32 %v517, %v507
        %v522 = vmax.f32 %v518, %v519
        %v523 = vmax.f32 %v520, %v521
        %v524 = vmax.f32 %v522, %v523
        %v525 = vrot.slane %v524, 4
        %v526 = vmax.f32 %v524, %v525
        %v527 = vrot.slane %v526, 2
        %v528 = vmax.f32 %v526, %v527
        %v529 = vrot.slane %v528, 1
        %v530 = vmax.f32 %v528, %v529
        %v531 = vmax.f32 %v509, %v530
        %v532 = vsub.f32 %v509, %v531
        %v533 = vmul.f32 %v532, 1.442695
        %v534 = vpow.pop %v533
        %v536 = vperm.slane %v531, 0
        %v538 = vsub.f32 %v470, %v536
        %v539 = vsub.f32 %v472, %v536
        %v540 = vsub.f32 %v475, %v536
        %v541 = vsub.f32 %v477, %v536
        %v542 = vsub.f32 %v480, %v536
        %v543 = vsub.f32 %v482, %v536
        %v544 = vsub.f32 %v485, %v536
        %v545 = vsub.f32 %v487, %v536
        %v546 = vsub.f32 %v490, %v536
        %v547 = vsub.f32 %v492, %v536
        %v548 = vsub.f32 %v495, %v536
        %v549 = vsub.f32 %v497, %v536
        %v550 = vsub.f32 %v500, %v536
        %v551 = vsub.f32 %v502, %v536
        %v552 = vsub.f32 %v505, %v536
        %v553 = vsub.f32 %v507, %v536
        %v554 = vmul.f32 %v538, 1.442695
        %v555 = vpow.pop %v554
        %v556 = vmul.f32 %v539, 1.442695
        %v557 = vpow.pop %v556
        %v558 = vmul.f32 %v540, 1.442695
        %v559 = vpow.pop %v558
        %v560 = vmul.f32 %v541, 1.442695
        %v561 = vpow.pop %v560
        %v562 = vmul.f32 %v542, 1.442695
        %v563 = vpow.pop %v562
        %v564 = vmul.f32 %v543, 1.442695
        %v565 = vpow.pop %v564
        %v566 = vmul.f32 %v544, 1.442695
        %v567 = vpow.pop %v566
        %v568 = vmul.f32 %v545, 1.442695
        %v569 = vpow.pop %v568
        %v570 = vmul.f32 %v546, 1.442695
        %v571 = vpow.pop %v570
        %v572 = vmul.f32 %v547, 1.442695
        %v573 = vpow.pop %v572
        %v574 = vmul.f32 %v548, 1.442695
        %v575 = vpow.pop %v574
        %v576 = vmul.f32 %v549, 1.442695
        %v577 = vpow.pop %v576
        %v578 = vmul.f32 %v550, 1.442695
        %v579 = vpow.pop %v578
        %v580 = vmul.f32 %v551, 1.442695
        %v581 = vpow.pop %v580
        %v582 = vmul.f32 %v552, 1.442695
        %v583 = vpow.pop %v582
        %v584 = vmul.f32 %v553, 1.442695
        %v585 = vpow.pop %v584
        %v586 = vld [vmem:[#allocation3] sm:$0x1]
        %v587 = vmul.f32 %v534, %v586
        %v588 = vadd.f32 %v555, %v557
        %v589 = vadd.f32 %v588, %v559
        %v590 = vadd.f32 %v589, %v561
        %v591 = vadd.f32 %v590, %v563
        %v592 = vadd.f32 %v591, %v565
        %v593 = vadd.f32 %v592, %v567
        %v594 = vadd.f32 %v593, %v569
        %v595 = vadd.f32 %v594, %v571
        %v596 = vadd.f32 %v595, %v573
        %v597 = vadd.f32 %v596, %v575
        %v598 = vadd.f32 %v597, %v577
        %v599 = vadd.f32 %v598, %v579
        %v600 = vadd.f32 %v599, %v581
        %v601 = vadd.f32 %v600, %v583
        %v602 = vadd.f32 %v601, %v585
        %v603 = vrot.slane %v602, 4
        %v604 = vadd.f32 %v602, %v603
        %v605 = vrot.slane %v604, 2
        %v606 = vadd.f32 %v604, %v605
        %v607 = vrot.slane %v606, 1
        %v608 = vadd.f32 %v606, %v607
        %v609 = vadd.f32 %v587, %v608
        %610 = vst [vmem:[#allocation3] sm:$0x1] %v609
        %v611 = vld [vmem:[#allocation4] sm:$0xf]
        %v613 = vperm.slane %v534, 0
        %v615 = vmul.f32 %v613, %v611
        %v616 = vpack.c.bf16 %v410, %v410
        %v617 = vpack.c.bf16 %v557, %v555
        %v618 = vpack.c.bf16 %v561, %v559
        %v619 = vpack.c.bf16 %v565, %v563
        %v620 = vpack.c.bf16 %v569, %v567
        %v621 = vpack.c.bf16 %v573, %v571
        %v622 = vpack.c.bf16 %v577, %v575
        %v623 = vpack.c.bf16 %v581, %v579
        %v624 = vpack.c.bf16 %v585, %v583
        %625 = vmatpush.bf16.msra.mxu0 %v624
        %626 = vmatpush.bf16.msra.mxu0 %v623
        %627 = vmatpush.bf16.msra.mxu0 %v622
        %628 = vmatpush.bf16.msra.mxu0 %v621
        %629 = vmatpush.bf16.msra.mxu0 %v620
        %630 = vmatpush.bf16.msra.mxu0 %v619
        %631 = vmatpush.bf16.msra.mxu0 %v618
        %632 = vmatpush.bf16.msra.mxu0 %v617
        %633 = vmatmul.bf16.gmra.mxu0 %v616
        %v634 = vpop.f32.mrf.mxu0
        %v635 = vadd.f32 0.0, %v634
        %v636 = vpop.f32.mrf.mxu0
        %637 = vdwg.mxu0
        %v638 = vadd.f32 %v615, %v635
        %639 = vst [vmem:[#allocation4] sm:$0xf] %v638
        %640 = vst [vmem:[#allocation2] sm:$0x1] %v531
        %p641 = scmp.eq.s32.totalorder %s33, 1
        // Predicated region
        $region61: #{tpu_custom_call.1} parent=39 // pred_check
          %p642 = pneg %p641
        $region62: #{tpu_custom_call.1} parent=39 // pred_check_branch
          %644 = sbr.rel (%p642) target = $region64
        $region63: #{tpu_custom_call.1} parent=39 // pred_region
          %v645 = vld [vmem:[#allocation3] sm:$0x1]
          %v646 = vrcp.pop %v645
          %v647 = vld [vmem:[#allocation4] sm:$0xf]
          %v649 = vperm.slane %v646, 0
          %v651 = vmul.f32 %v647, %v649
          %652 = vst [vmem:[%s338] sm:$0xf] %v651
        $region64: #{tpu_custom_call.1} parent=39 // pred_fallthru
          _
        %s653 = sand.u32 %s174, 1
        %s654 = scalar_lea.sflag [#allocation7], %s653
        %s655 = sand.u32 %s174, 1
        %s656 = smul.addr %s655, 4
        %s657 = scalar_lea.vmem [#allocation13], %s656
        // Predicated region
        $region65: #{tpu_custom_call.1} parent=39 // pred_check
          %p658 = pneg %p184
        $region66: #{tpu_custom_call.1} parent=39 // pred_check_branch
          %660 = sbr.rel (%p658) target = $region68
        $region67: #{tpu_custom_call.1} parent=39 // pred_region
          %662 = vsyncadd %s654, 0
          %s663 = smul.addr %s31, 2
          %s664 = sadd.s32 %s32, %s663
          %s665 = smul.addr %s664, 4
          %s666 = scalar_lea.hbm %s5, %s665
          %s668 = sshll.u32 %s657, 4
          %s669 = int_to_ptr.vmem [resolvable:$true] %s668
          %s670 = sshll.u32 %s666, 4
          %s671 = int_to_ptr.hbm [resolvable:$true] %s670
          %673 = dma.vmem_to_hbm [thread:$0]  %s669, 64, %s671, %s654
        $region68: #{tpu_custom_call.1} parent=39 // pred_fallthru
          _
      $region40: #{tpu_custom_call.1} parent=5 // pred_fallthru
        _
      %p674 = scmp.le.s32.totalorder 2, %s21
      // Predicated region
      $region69: #{tpu_custom_call.1} parent=5 // pred_check
        %p675 = pneg %p674
      $region70: #{tpu_custom_call.1} parent=5 // pred_check_branch
        %677 = sbr.rel (%p675) target = $region72
      $region71: #{tpu_custom_call.1} parent=5 // pred_region
        %s678 = ssub.s32 %s21, 2
        // Predicated region
        $region73: #{tpu_custom_call.1} parent=71 // pred_check
          %p679 = pneg %p190
        $region74: #{tpu_custom_call.1} parent=71 // pred_check_branch
          %681 = sbr.rel (%p679) target = $region76
        $region75: #{tpu_custom_call.1} parent=71 // pred_region
          %s682 = sand.u32 %s175, 1
          %s683 = scalar_lea.sflag [#allocation7], %s682
          %s684 = sand.u32 %s175, 1
          %s685 = smul.addr %s684, 4
          %s686 = scalar_lea.vmem [#allocation13], %s685
          %688 = dma.done %s683, 64
        $region76: #{tpu_custom_call.1} parent=71 // pred_fallthru
          _
      $region72: #{tpu_custom_call.1} parent=5 // pred_fallthru
        _
    $region6: #{tpu_custom_call.1} parent=1 // loop_footer
      %s25 = sadd.s32 1, %s21
    $region7: #{tpu_custom_call.1} parent=1 // loop_footer_branch
      %20 = sbr.rel target = $region3
    $region8: #{tpu_custom_call.1} parent=1 // loop_exit
      _
    %689 = vsyncpa [#allocation6], 1
    %s690 = scalar_lea.sflag [#allocation6], 1
    %691 = vsyncpa %s690, 1
    %692 = vsyncpa [#allocation9], 1
    %s693 = scalar_lea.sflag [#allocation9], 1
    %694 = vsyncpa %s693, 1
    %695 = vsyncpa [#allocation12], 1
    %696 = vsyncpa [#allocation7], 1
    %s697 = scalar_lea.sflag [#allocation7], 1
    %698 = vsyncpa %s697, 1

</llo_original>
